<compile_context>
chip_gen: v5e
topology: v5e:2x2
jax: 0.10.0
libtpu: 0.0.40
codegen_flags: <defaults>
</compile_context>

<pallas_src>
import functools

import jax
import jax.numpy as jnp
from jax.experimental import pallas as pl
from jax.experimental.pallas import tpu as pltpu

LANES = 128


# --------------------------------------------------------------------------- #
# Kernel
# --------------------------------------------------------------------------- #
def _fastdelu_kernel(ab_ref, x_ref, o_ref, *, compute_dtype):
    # ab_ref: SMEM (2,) f32 -> [-a, -b] (negations pre-folded on host).
    neg_a = ab_ref[0].astype(compute_dtype)
    neg_b = ab_ref[1].astype(compute_dtype)
    x = x_ref[...].astype(compute_dtype)
    y = x * jnp.exp(neg_a * jnp.exp(neg_b * x))
    o_ref[...] = y.astype(o_ref.dtype)


# --------------------------------------------------------------------------- #
# Chip heuristics (affect tiling/dtype choices only, never correctness)
# --------------------------------------------------------------------------- #
def _device_kind():
    try:
        return jax.devices()[0].device_kind.lower()
    except Exception:  # pragma: no cover - defensive
        return ""


def _num_tensorcores(kind):
    # v4/v5p megacore and v7x expose 2 TensorCores per device; v5e/v6e have 1.
    if any(tag in kind for tag in ("v4", "v5p", "v7", "tpu7")):
        return 2
    return 1


def _supports_bf16_compute(kind):
    # bf16 VPU/EUP exists on v6e and newer; be conservative elsewhere.
    return any(tag in kind for tag in ("v6", "v7", "tpu7"))


def _round_up(x, m):
    return -(-x // m) * m


# --------------------------------------------------------------------------- #
# Pure-JAX path (small / ragged inputs, and the numerical reference)
# --------------------------------------------------------------------------- #
def _fastdelu_jax(x, a, b):
    xf = x.astype(jnp.float32)
    a32 = jnp.asarray(a, jnp.float32)
    b32 = jnp.asarray(b, jnp.float32)
    return (xf * jnp.exp(-a32 * jnp.exp(-b32 * xf))).astype(x.dtype)


def fastdelu_reference(x, a, b):
    return _fastdelu_jax(x, a, b)


# --------------------------------------------------------------------------- #
# Wrapper
# --------------------------------------------------------------------------- #
def fastdelu(x, a, b, *, block_bytes=2 << 20, min_pallas_bytes=1 << 18):
    """Applies FastDELU elementwise. x: any shape (e.g. NCHW). a, b: scalars."""
    orig_shape = x.shape
    orig_dtype = x.dtype
    n = x.size
    itemsize = jnp.dtype(orig_dtype).itemsize
    nbytes = n * itemsize

    # Bypass: small tensors (launch overhead dominates; XLA can fuse with the
    # producer) and lane-ragged sizes (avoids pad + slice HBM round trips).
    if n == 0 or (n % LANES) != 0 or nbytes < max(min_pallas_bytes, LANES * 8 * itemsize):
        return _fastdelu_jax(x, a, b)

    kind = _device_kind()
    rows = n // LANES
    x2d = x.reshape(rows, LANES)

    # dtype-native sublane tile: 8 rows (f32), 16 (bf16/f16), 32 (int8/fp8).
    sub = max(8, 32 // itemsize)

    # ~2 MiB tiles; in+out double buffered = 4x tile < every chip's default
    # scoped-VMEM limit (incl. v5e's 16 MiB), so no vmem_limit override needed.
    br = (block_bytes // (LANES * itemsize)) // sub * sub
    br = min(br, (rows // sub) * sub)
    if br <= 0:
        br = rows  # tiny forced-kernel case: single block == full array dim

    # Split a single-tile input across the two TensorCores only on 2-TC parts
    # and only when each half is big enough to amortize per-program overhead.
    if pl.cdiv(rows, br) < 2 and _num_tensorcores(kind) >= 2 and nbytes >= (512 << 10):
        half = _round_up(pl.cdiv(rows, 2), sub)
        br = max(sub, min(half, br))

    grid = (pl.cdiv(rows, br),)

    # bf16 compute fast path on chips with bf16 VPU/EUP; f32 compute otherwise.
    if orig_dtype == jnp.bfloat16 and _supports_bf16_compute(kind):
        compute_dtype = jnp.bfloat16
    else:
        compute_dtype = jnp.float32

    # Fold negations host-side: kernel sees [-a, -b].
    ab = -jnp.stack([jnp.asarray(a, jnp.float32), jnp.asarray(b, jnp.float32)])

    kernel = functools.partial(_fastdelu_kernel, compute_dtype=compute_dtype)

    # NOTE: for inference-only use, input_output_aliases={1: 0} would reuse the
    # input buffer for the output; omitted here since x may feed the backward.
    out2d = pl.pallas_call(
        kernel,
        out_shape=jax.ShapeDtypeStruct((rows, LANES), orig_dtype),
        grid_spec=pltpu.PrefetchScalarGridSpec(
            num_scalar_prefetch=0,
            grid=grid,
            in_specs=[
                pl.BlockSpec(memory_space=pltpu.SMEM),          # [-a, -b] scalars
                pl.BlockSpec((br, LANES), lambda i: (i, 0)),    # x tile
            ],
            out_specs=pl.BlockSpec((br, LANES), lambda i: (i, 0)),
        ),
        compiler_params=pltpu.CompilerParams(
            dimension_semantics=("parallel",)
        ),
    )(ab, x2d)

    return out2d.reshape(orig_shape)


# --------------------------------------------------------------------------- #
# Test
# --------------------------------------------------------------------------- #
if __name__ == "__main__":
    key = jax.random.PRNGKey(0)
    # nn.Parameter(torch.tensor(1.0)) defaults.
    initial_a = 1.0
    initial_b = 1.0

    # Small NCHW input consistent with typical use of this activation.
    x = jax.random.normal(key, (2, 4, 16, 16), dtype=jnp.float32)
    y_ref = fastdelu_reference(x, initial_a, initial_b)

    # Default path: this size goes through the fused-XLA bypass.
    y_bypass = jax.block_until_ready(fastdelu(x, initial_a, initial_b))
    assert y_bypass.shape == x.shape and y_bypass.dtype == x.dtype
    assert jnp.allclose(y_bypass, y_ref, atol=1e-5, rtol=1e-5), "bypass mismatch"

    # Forced Pallas path (disable the small-input bypass) to exercise the kernel.
    y_kernel = jax.block_until_ready(
        fastdelu(x, initial_a, initial_b, min_pallas_bytes=0))
    assert y_kernel.shape == x.shape and y_kernel.dtype == x.dtype
    assert jnp.allclose(y_kernel, y_ref, atol=1e-5, rtol=1e-5), "kernel mismatch"

    # bf16 fast path (bf16 compute on v6e/v7x, f32 compute elsewhere).
    xb = x.astype(jnp.bfloat16)
    yb = jax.block_until_ready(
        fastdelu(xb, initial_a, initial_b, min_pallas_bytes=0))
    yb_ref = fastdelu_reference(xb, initial_a, initial_b)
    assert yb.shape == xb.shape and yb.dtype == jnp.bfloat16
    assert jnp.allclose(yb.astype(jnp.float32), yb_ref.astype(jnp.float32),
                        atol=3e-2, rtol=3e-2), "bf16 kernel mismatch"

    print("KERNEL_OK")
</pallas_src>

<mosaic_0001>
module attributes {stable_mosaic.version = 11 : i64} {
  func.func @_fastdelu_kernel(%arg0: i32, %arg1: memref<2xf32, #tpu.memory_space<smem>>, %arg2: memref<16x128xf32, #tpu.memory_space<vmem>>, %arg3: memref<16x128xf32, #tpu.memory_space<vmem>>) attributes {dimension_semantics = [#tpu.dimension_semantics<parallel>], iteration_bounds = array<i64: 1>, scalar_prefetch = 0 : i64, scratch_operands = 0 : i64, tpu.core_type = #tpu.core_type<tc>, window_params = [{transform_indices = @transform_0, window_bounds = array<i64: 2>}, {transform_indices = @transform_1, window_bounds = array<i64: 16, 128>}, {transform_indices = @transform_2, window_bounds = array<i64: 16, 128>}]} {
    %c0 = arith.constant 0 : index
    %0 = memref.load %arg1[%c0] : memref<2xf32, #tpu.memory_space<smem>>
    %c1 = arith.constant 1 : index
    %1 = memref.load %arg1[%c1] : memref<2xf32, #tpu.memory_space<smem>>
    %c0_0 = arith.constant 0 : index
    %c0_1 = arith.constant 0 : index
    %2 = vector.load %arg2[%c0_0, %c0_1] : memref<16x128xf32, #tpu.memory_space<vmem>>, vector<16x128xf32>
    %3 = vector.broadcast %1 : f32 to vector<16x128xf32>
    %4 = arith.mulf %3, %2 : vector<16x128xf32>
    %5 = math.exp %4 : vector<16x128xf32>
    %6 = vector.broadcast %0 : f32 to vector<16x128xf32>
    %7 = arith.mulf %6, %5 : vector<16x128xf32>
    %8 = math.exp %7 : vector<16x128xf32>
    %9 = arith.mulf %2, %8 : vector<16x128xf32>
    %c0_2 = arith.constant 0 : index
    %c0_3 = arith.constant 0 : index
    %10 = vector.load %arg3[%c0_2, %c0_3] : memref<16x128xf32, #tpu.memory_space<vmem>>, vector<16x128xf32>
    tpu.vector_store %arg3[%c0_2, %c0_3], %9 {strides = array<i32>} : memref<16x128xf32, #tpu.memory_space<vmem>>, vector<16x128xf32>,
    return
  }
  func.func @transform_0(%arg0: i32) -> i32 {
    %c0_i32 = arith.constant 0 : i32
    %c0_i32_0 = arith.constant 0 : i32
    return %c0_i32 : i32
  }
  func.func @transform_1(%arg0: i32) -> (i32, i32) {
    %c0_i32 = arith.constant 0 : i32
    %c0_i32_0 = arith.constant 0 : i32
    return %arg0, %c0_i32 : i32, i32
  }
  func.func @transform_2(%arg0: i32) -> (i32, i32) {
    %c0_i32 = arith.constant 0 : i32
    %c0_i32_0 = arith.constant 0 : i32
    return %arg0, %c0_i32 : i32, i32
  }
}

</mosaic_0001>

<llo_original>
// kernel: tpu_custom_call.1
$region0: #{tpu_custom_call.1}
  #allocation0 [shape = 'u32[]', space=smem, size = 0x4, offset = 0x4, fixed_abs, tag = 'smem constant byte address 0x4 - core index']
  #allocation1 [shape = 'u32[72,128]{1,0:T(1,128)}', space=vmem, size = 0x9000, scoped, tag = 'internal scratch']
  %s0 = inlined_call_operand.hbm [shape: f32[2], index: 0, kind: input, shape index: {}]
  %s1 = inlined_call_operand.hbm [shape: f32[16,128], index: 1, kind: input, shape index: {}]
  %s2 = inlined_call_operand.hbm [shape: f32[16,128], index: 2, kind: output, shape index: {}]
  %s3 = sld [smem:[#allocation0]]
  $region26: #{tpu_custom_call.1} parent=0
    _
  %s5 = ssub.s32 1, %s3
  %s6 = scalar_select 0, %s5, %s3
  $region1: #{tpu_custom_call.1} parent=0
    #allocation2 [shape = 'u8[512]{0}', space=smem, size = 0x200, scoped, tag = 'input window, operand 0, single buffered']
    #allocation3 [shape = 's32[1]{0}', space=sflag, size = 0x4, scoped, tag = 'scoped memory for tpu_custom_call.1']
    #allocation4 [shape = 's32[1]{0}', space=sflag, size = 0x4, scoped, tag = 'scoped memory for tpu_custom_call.1']
    #allocation5 [shape = 's32[1]{0}', space=sflag, size = 0x4, scoped, tag = 'scoped memory for tpu_custom_call.1']
    #allocation6 [shape = 'u8[8192]{0}', space=vmem, size = 0x2000, scoped, tag = 'input window, operand 1, single buffered']
    #allocation7 [shape = 'u8[8192]{0}', space=vmem, size = 0x2000, scoped, tag = 'output window, operand 0, single buffered']
    %7 = vsyncpa [#allocation5], 0
    %8 = vsyncpa [#allocation3], 0
    %9 = vsyncpa [#allocation4], 0
    // Predicated region
    $region2: #{tpu_custom_call.1} parent=1 // pred_check
      _
    $region3: #{tpu_custom_call.1} parent=1 // pred_check_branch
      %11 = sbr.rel (0) target = $region5
    $region4: #{tpu_custom_call.1} parent=1 // pred_region
      %13 = vsyncadd [#allocation5], 0
      %s15 = sshll.u32 %s0, 4
      %s16 = int_to_ptr.hbm [resolvable:$true] %s15
      %18 = dma.hbm_to_smem %s16, 16, [#allocation2], [#allocation5]
    $region5: #{tpu_custom_call.1} parent=1 // pred_fallthru
      _
    // Predicated region
    $region6: #{tpu_custom_call.1} parent=1 // pred_check
      _
    $region7: #{tpu_custom_call.1} parent=1 // pred_check_branch
      %20 = sbr.rel (0) target = $region9
    $region8: #{tpu_custom_call.1} parent=1 // pred_region
      %22 = vsyncadd [#allocation3], 0
      %s23 = sshll.u32 %s1, 4
      %s24 = int_to_ptr.hbm [resolvable:$true] %s23
      %s25 = sshll.u32 [#allocation6], 4
      %s26 = int_to_ptr.vmem [resolvable:$true] %s25
      %31 = dma.hbm_to_vmem [thread:$0]  %s24, 256, %s26, [#allocation3], 128, 128, 8
    $region9: #{tpu_custom_call.1} parent=1 // pred_fallthru
      _
    // Predicated region
    $region10: #{tpu_custom_call.1} parent=1 // pred_check
      _
    $region11: #{tpu_custom_call.1} parent=1 // pred_check_branch
      %33 = sbr.rel (0) target = $region13
    $region12: #{tpu_custom_call.1} parent=1 // pred_region
      %35 = dma.done [#allocation5], 16
    $region13: #{tpu_custom_call.1} parent=1 // pred_fallthru
      _
    // Predicated region
    $region14: #{tpu_custom_call.1} parent=1 // pred_check
      _
    $region15: #{tpu_custom_call.1} parent=1 // pred_check_branch
      %37 = sbr.rel (0) target = $region17
    $region16: #{tpu_custom_call.1} parent=1 // pred_region
      %39 = dma.done [#allocation3], 256
    $region17: #{tpu_custom_call.1} parent=1 // pred_fallthru
      _
    %40 = sfence
    %s41 = sld [smem:[#allocation2]]
    %s42 = sld [smem:[#allocation2 + $0x1]]
    %v43 = vld [vmem:[#allocation6] sm:$0xff]
    %v44 = vld [vmem:[#allocation6 + $0x8] sm:$0xff]
    %v45 = vstv %s42
    %v46 = vmul.f32 %v45, %v43
    %v47 = vmul.f32 %v45, %v44
    %v48 = vmul.f32 %v46, 1.442695
    %v49 = vpow.pop %v48
    %v50 = vmul.f32 %v47, 1.442695
    %v51 = vpow.pop %v50
    %v52 = vstv %s41
    %v53 = vmul.f32 %v52, %v49
    %v54 = vmul.f32 %v52, %v51
    %v55 = vmul.f32 %v53, 1.442695
    %v56 = vpow.pop %v55
    %v57 = vmul.f32 %v54, 1.442695
    %v58 = vpow.pop %v57
    %v59 = vmul.f32 %v43, %v56
    %v60 = vmul.f32 %v44, %v58
    %61 = vst [vmem:[#allocation7] sm:$0xff] %v59
    %62 = vst [vmem:[#allocation7 + $0x8] sm:$0xff] %v60
    // Predicated region
    $region18: #{tpu_custom_call.1} parent=1 // pred_check
      _
    $region19: #{tpu_custom_call.1} parent=1 // pred_check_branch
      %64 = sbr.rel (0) target = $region21
    $region20: #{tpu_custom_call.1} parent=1 // pred_region
      %66 = vsyncadd [#allocation4], 0
      %s67 = sshll.u32 [#allocation7], 4
      %s68 = int_to_ptr.vmem [resolvable:$true] %s67
      %s69 = sshll.u32 %s2, 4
      %s70 = int_to_ptr.hbm [resolvable:$true] %s69
      %75 = dma.vmem_to_hbm [thread:$0]  %s68, 256, %s70, [#allocation4], 128, 128, 8
    $region21: #{tpu_custom_call.1} parent=1 // pred_fallthru
      _
    // Predicated region
    $region22: #{tpu_custom_call.1} parent=1 // pred_check
      _
    $region23: #{tpu_custom_call.1} parent=1 // pred_check_branch
      %77 = sbr.rel (0) target = $region25
    $region24: #{tpu_custom_call.1} parent=1 // pred_region
      %79 = dma.done [#allocation4], 256
    $region25: #{tpu_custom_call.1} parent=1 // pred_fallthru
      _
    %80 = vsyncpa [#allocation3], 1
    %81 = vsyncpa [#allocation4], 1
    %82 = vsyncpa [#allocation5], 1

</llo_original>
